<compile_context>
chip_gen: v5e
topology: v5e:2x2
jax: 0.10.0
libtpu: 0.0.40
codegen_flags: <defaults>
</compile_context>

<pallas_src>
import functools

import jax
import jax.numpy as jnp
from jax.experimental import pallas as pl
from jax.experimental.pallas import tpu as pltpu

HIDDEN = 256
LANE = 128
SUBLANE = 8


def _round_up(n, m):
    return ((n + m - 1) // m) * m


def _elementwise_dtype():
    """Inter-layer elementwise dtype: bf16 where the VPU supports it (v6e/v7x),
    f32 on v5e and older generations (no bf16 VPU/EUP)."""
    try:
        kind = jax.devices()[0].device_kind.lower()
    except Exception:
        return jnp.float32
    if any(g in kind for g in ("v2", "v3", "v4", "v5")):
        return jnp.float32
    return jnp.bfloat16


def _pick_tile(pb):
    """Row tile: cap at 128 rows (bounds pad waste, v5e-friendly); split any
    batch >= 16 rows into >= 2 grid steps so v7x's second TC gets work."""
    if pb < 2 * SUBLANE:
        return pb
    return min(128, _round_up(pb // 2, SUBLANE))


def policy_kernel(x_ref, w1_ref, b1_ref, w2_ref, b2_ref, w3_ref, b3_ref, o_ref,
                  *, inter_dtype):
    # Whole (row-tile of the) forward pass fused in VMEM.
    f32 = jnp.float32
    x = x_ref[...].astype(jnp.bfloat16)

    # fc1 + relu1: bf16 MXU operands, f32 accumulate; bias/ReLU in inter_dtype.
    h1 = jnp.dot(x, w1_ref[...], preferred_element_type=f32).astype(inter_dtype)
    h1 = jnp.maximum(h1 + b1_ref[...].astype(inter_dtype), 0).astype(jnp.bfloat16)

    # fc2 + relu2
    h2 = jnp.dot(h1, w2_ref[...], preferred_element_type=f32).astype(inter_dtype)
    h2 = jnp.maximum(h2 + b2_ref[...].astype(inter_dtype), 0).astype(jnp.bfloat16)

    # fcfinal (output lane-padded to a multiple of 128; pad lanes carry a
    # -1e30 bias, added in f32, so softmax gives them exactly 0).
    logits = jnp.dot(h2, w3_ref[...], preferred_element_type=f32) + b3_ref[...]

    # Numerically-stable softmax over the lane-dense last axis, all in f32.
    m = jnp.max(logits, axis=-1, keepdims=True)
    e = jnp.exp(logits - m)
    denom = jnp.sum(e, axis=-1, keepdims=True)
    # approx=False: exact normalization (consumers may sample from these).
    o_ref[...] = (e * pl.reciprocal(denom, approx=False)).astype(o_ref.dtype)


def policy_forward(x, params, out_size):
    """x: (batch, input_size) f32.  params: output of prepare_policy_params."""
    w1, b1, w2, b2, w3p, b3p = params
    batch, in_size = x.shape
    in_pad = w1.shape[0]       # lane-padded input feature dim (multiple of 128)
    out_pad = w3p.shape[1]     # lane-padded output dim (multiple of 128)

    pb = _round_up(batch, SUBLANE)
    tb = _pick_tile(pb)
    pb = _round_up(pb, tb)

    # Zero-pad rows up to the tiled batch and columns up to the lane-padded
    # feature dim (zero rows/cols are inert; pad rows are sliced off below).
    if pb != batch or in_pad != in_size:
        x = jnp.pad(x, ((0, pb - batch), (0, in_pad - in_size)))

    # Grid-invariant blocks: DMA'd once, VMEM-resident across all row tiles.
    # (pl.Buffered(1) could drop their redundant second buffer; skipped --
    #  ~210 KB, negligible at this footprint.)
    const = lambda a: pl.BlockSpec(a.shape, lambda i: (0,) * a.ndim)

    kernel = functools.partial(policy_kernel, inter_dtype=_elementwise_dtype())

    out = pl.pallas_call(
        kernel,
        out_shape=jax.ShapeDtypeStruct((pb, out_pad), jnp.float32),
        grid=(pb // tb,),
        in_specs=[
            pl.BlockSpec((tb, in_pad), lambda i: (i, 0)),  # x row tile (lane-dense)
            const(w1), const(b1),
            const(w2), const(b2),
            const(w3p), const(b3p),
        ],
        out_specs=pl.BlockSpec((tb, out_pad), lambda i: (i, 0)),
        compiler_params=pltpu.CompilerParams(
            # "parallel" shards the row-tile axis across v7x's two TensorCores
            # (>= 2 steps whenever batch >= 16); no-op on single-TC chips.
            dimension_semantics=("parallel",),
        ),
    )(x, w1, b1, w2, b2, w3p, b3p)

    return out[:batch, :out_size]


def init_policy_params(key, input_size, output_size, hidden=HIDDEN):
    # Deterministic synthetic init (PyTorch-Linear-like uniform scaling), f32.
    ks = jax.random.split(key, 6)

    def linear(kw, kb, fan_in, fan_out):
        bound = 1.0 / jnp.sqrt(fan_in)
        w = jax.random.uniform(kw, (fan_in, fan_out), jnp.float32, -bound, bound)
        b = jax.random.uniform(kb, (1, fan_out), jnp.float32, -bound, bound)
        return w, b

    w1, b1 = linear(ks[0], ks[1], input_size, hidden)
    w2, b2 = linear(ks[2], ks[3], hidden, hidden)
    w3, b3 = linear(ks[4], ks[5], hidden, output_size)
    return (w1, b1, w2, b2, w3, b3)


def prepare_policy_params(params):
    """bf16-cast weights (MXU native); lane-pad fc1 inputs and fcfinal outputs
    to multiples of 128 (zero w1 rows / zero w3 cols, -1e30 fcfinal pad bias)."""
    w1, b1, w2, b2, w3, b3 = params
    in_size = w1.shape[0]
    out_size = w3.shape[1]
    in_pad = _round_up(in_size, LANE) - in_size
    out_pad = _round_up(out_size, LANE) - out_size

    w1p = jnp.pad(w1, ((0, in_pad), (0, 0)))                        # zero rows
    w3p = jnp.pad(w3, ((0, 0), (0, out_pad)))                       # zero cols
    b3p = jnp.pad(b3, ((0, 0), (0, out_pad)), constant_values=-1e30)  # softmax->0

    return (w1p.astype(jnp.bfloat16), b1,
            w2.astype(jnp.bfloat16), b2,
            w3p.astype(jnp.bfloat16), b3p)


def _reference(x, raw_params):
    w1, b1, w2, b2, w3, b3 = raw_params
    h1 = jnp.maximum(x @ w1 + b1, 0.0)
    h2 = jnp.maximum(h1 @ w2 + b2, 0.0)
    return jax.nn.softmax(h2 @ w3 + b3, axis=-1)


if __name__ == "__main__":
    key = jax.random.PRNGKey(0)
    k_x, k_x2, k_p = jax.random.split(key, 3)

    batch, input_size, output_size = 8, 32, 16
    raw_params = init_policy_params(k_p, input_size, output_size)
    params = prepare_policy_params(raw_params)

    # Case 1: small per-env-step batch (single row tile).
    x = jax.random.normal(k_x, (batch, input_size), jnp.float32)
    out = jax.block_until_ready(policy_forward(x, params, output_size))
    ref = _reference(x, raw_params)
    assert out.shape == (batch, output_size)
    err = float(jnp.max(jnp.abs(out - ref)))
    assert err < 3e-2, f"case1 max abs error {err}"
    assert jnp.allclose(jnp.sum(out, axis=-1), 1.0, atol=1e-3)

    # Case 2: ragged batch (exercises row padding + the 2-step parallel grid).
    batch2 = 20
    x2 = jax.random.normal(k_x2, (batch2, input_size), jnp.float32)
    out2 = jax.block_until_ready(policy_forward(x2, params, output_size))
    ref2 = _reference(x2, raw_params)
    assert out2.shape == (batch2, output_size)
    err2 = float(jnp.max(jnp.abs(out2 - ref2)))
    assert err2 < 3e-2, f"case2 max abs error {err2}"
    assert jnp.allclose(jnp.sum(out2, axis=-1), 1.0, atol=1e-3)

    print("KERNEL_OK")
</pallas_src>

<mosaic_0001>
module attributes {stable_mosaic.version = 11 : i64} {
  func.func @policy_kernel(%arg0: i32, %arg1: memref<8x128xf32, #tpu.memory_space<vmem>>, %arg2: memref<128x256xbf16, #tpu.memory_space<vmem>>, %arg3: memref<1x256xf32, #tpu.memory_space<vmem>>, %arg4: memref<256x256xbf16, #tpu.memory_space<vmem>>, %arg5: memref<1x256xf32, #tpu.memory_space<vmem>>, %arg6: memref<256x128xbf16, #tpu.memory_space<vmem>>, %arg7: memref<1x128xf32, #tpu.memory_space<vmem>>, %arg8: memref<8x128xf32, #tpu.memory_space<vmem>>) attributes {dimension_semantics = [#tpu.dimension_semantics<parallel>], iteration_bounds = array<i64: 1>, scalar_prefetch = 0 : i64, scratch_operands = 0 : i64, tpu.core_type = #tpu.core_type<tc>, window_params = [{transform_indices = @transform_0, window_bounds = array<i64: 8, 128>}, {pipeline_mode = #tpu.pipeline_mode<synchronous>, transform_indices = @transform_1, window_bounds = array<i64: 128, 256>}, {pipeline_mode = #tpu.pipeline_mode<synchronous>, transform_indices = @transform_2, window_bounds = array<i64: 1, 256>}, {pipeline_mode = #tpu.pipeline_mode<synchronous>, transform_indices = @transform_3, window_bounds = array<i64: 256, 256>}, {pipeline_mode = #tpu.pipeline_mode<synchronous>, transform_indices = @transform_4, window_bounds = array<i64: 1, 256>}, {pipeline_mode = #tpu.pipeline_mode<synchronous>, transform_indices = @transform_5, window_bounds = array<i64: 256, 128>}, {pipeline_mode = #tpu.pipeline_mode<synchronous>, transform_indices = @transform_6, window_bounds = array<i64: 1, 128>}, {transform_indices = @transform_7, window_bounds = array<i64: 8, 128>}]} {
    %c0 = arith.constant 0 : index
    %c0_0 = arith.constant 0 : index
    %0 = vector.load %arg1[%c0, %c0_0] : memref<8x128xf32, #tpu.memory_space<vmem>>, vector<8x128xf32>
    %1 = arith.truncf %0 : vector<8x128xf32> to vector<8x128xbf16>
    %c0_1 = arith.constant 0 : index
    %c0_2 = arith.constant 0 : index
    %2 = vector.load %arg2[%c0_1, %c0_2] : memref<128x256xbf16, #tpu.memory_space<vmem>>, vector<128x256xbf16>
    %cst = arith.constant dense<0.000000e+00> : vector<8x256xf32>
    %3 = tpu.matmul %1, %2, %cst {dimension_numbers = #tpu.dot_dimension_numbers<[1], [0], [0], [1], [0, 0, 1, 1], [], []>} : vector<8x128xbf16>, vector<128x256xbf16>, vector<8x256xf32> -> vector<8x256xf32>
    %4 = arith.truncf %3 : vector<8x256xf32> to vector<8x256xbf16>
    %c0_3 = arith.constant 0 : index
    %c0_4 = arith.constant 0 : index
    %5 = vector.load %arg3[%c0_3, %c0_4] : memref<1x256xf32, #tpu.memory_space<vmem>>, vector<1x256xf32>
    %6 = arith.truncf %5 : vector<1x256xf32> to vector<1x256xbf16>
    %7 = vector.broadcast %6 : vector<1x256xbf16> to vector<8x256xbf16>
    %8 = arith.addf %4, %7 : vector<8x256xbf16>
    %cst_5 = arith.constant 0.000000e+00 : bf16
    %9 = vector.broadcast %cst_5 : bf16 to vector<8x256xbf16>
    %10 = arith.maximumf %8, %9 : vector<8x256xbf16>
    %c0_6 = arith.constant 0 : index
    %c0_7 = arith.constant 0 : index
    %11 = vector.load %arg4[%c0_6, %c0_7] : memref<256x256xbf16, #tpu.memory_space<vmem>>, vector<256x256xbf16>
    %cst_8 = arith.constant dense<0.000000e+00> : vector<8x256xf32>
    %12 = tpu.matmul %10, %11, %cst_8 {dimension_numbers = #tpu.dot_dimension_numbers<[1], [0], [0], [1], [0, 0, 1, 1], [], []>} : vector<8x256xbf16>, vector<256x256xbf16>, vector<8x256xf32> -> vector<8x256xf32>
    %13 = arith.truncf %12 : vector<8x256xf32> to vector<8x256xbf16>
    %c0_9 = arith.constant 0 : index
    %c0_10 = arith.constant 0 : index
    %14 = vector.load %arg5[%c0_9, %c0_10] : memref<1x256xf32, #tpu.memory_space<vmem>>, vector<1x256xf32>
    %15 = arith.truncf %14 : vector<1x256xf32> to vector<1x256xbf16>
    %16 = vector.broadcast %15 : vector<1x256xbf16> to vector<8x256xbf16>
    %17 = arith.addf %13, %16 : vector<8x256xbf16>
    %cst_11 = arith.constant 0.000000e+00 : bf16
    %18 = vector.broadcast %cst_11 : bf16 to vector<8x256xbf16>
    %19 = arith.maximumf %17, %18 : vector<8x256xbf16>
    %c0_12 = arith.constant 0 : index
    %c0_13 = arith.constant 0 : index
    %20 = vector.load %arg6[%c0_12, %c0_13] : memref<256x128xbf16, #tpu.memory_space<vmem>>, vector<256x128xbf16>
    %cst_14 = arith.constant dense<0.000000e+00> : vector<8x128xf32>
    %21 = tpu.matmul %19, %20, %cst_14 {dimension_numbers = #tpu.dot_dimension_numbers<[1], [0], [0], [1], [0, 0, 1, 1], [], []>} : vector<8x256xbf16>, vector<256x128xbf16>, vector<8x128xf32> -> vector<8x128xf32>
    %c0_15 = arith.constant 0 : index
    %c0_16 = arith.constant 0 : index
    %22 = vector.load %arg7[%c0_15, %c0_16] : memref<1x128xf32, #tpu.memory_space<vmem>>, vector<1x128xf32>
    %23 = vector.broadcast %22 : vector<1x128xf32> to vector<8x128xf32>
    %24 = arith.addf %21, %23 : vector<8x128xf32>
    %cst_17 = arith.constant dense<0xFF800000> : vector<8xf32>
    %25 = vector.multi_reduction <maximumf>, %24, %cst_17 [1] : vector<8x128xf32> to vector<8xf32>
    %26 = vector.shape_cast %25 : vector<8xf32> to vector<8x1xf32>
    %27 = vector.broadcast %26 : vector<8x1xf32> to vector<8x128xf32>
    %28 = arith.subf %24, %27 : vector<8x128xf32>
    %29 = math.exp %28 : vector<8x128xf32>
    %cst_18 = arith.constant dense<0.000000e+00> : vector<8xf32>
    %30 = vector.multi_reduction <add>, %29, %cst_18 [1] : vector<8x128xf32> to vector<8xf32>
    %31 = vector.shape_cast %30 : vector<8xf32> to vector<8x1xf32>
    %32 = tpu.reciprocal %31 : vector<8x1xf32> -> vector<8x1xf32>
    %33 = vector.broadcast %32 : vector<8x1xf32> to vector<8x128xf32>
    %34 = arith.mulf %29, %33 : vector<8x128xf32>
    %c0_19 = arith.constant 0 : index
    %c0_20 = arith.constant 0 : index
    %35 = vector.load %arg8[%c0_19, %c0_20] : memref<8x128xf32, #tpu.memory_space<vmem>>, vector<8x128xf32>
    tpu.vector_store %arg8[%c0_19, %c0_20], %34 {strides = array<i32>} : memref<8x128xf32, #tpu.memory_space<vmem>>, vector<8x128xf32>,
    return
  }
  func.func @transform_0(%arg0: i32) -> (i32, i32) {
    %c0_i32 = arith.constant 0 : i32
    %c0_i32_0 = arith.constant 0 : i32
    return %arg0, %c0_i32 : i32, i32
  }
  func.func @transform_1(%arg0: i32) -> (i32, i32) {
    %c0_i32 = arith.constant 0 : i32
    %c0_i32_0 = arith.constant 0 : i32
    %c0_i32_1 = arith.constant 0 : i32
    return %c0_i32, %c0_i32_0 : i32, i32
  }
  func.func @transform_2(%arg0: i32) -> (i32, i32) {
    %c0_i32 = arith.constant 0 : i32
    %c0_i32_0 = arith.constant 0 : i32
    %c0_i32_1 = arith.constant 0 : i32
    return %c0_i32, %c0_i32_0 : i32, i32
  }
  func.func @transform_3(%arg0: i32) -> (i32, i32) {
    %c0_i32 = arith.constant 0 : i32
    %c0_i32_0 = arith.constant 0 : i32
    %c0_i32_1 = arith.constant 0 : i32
    return %c0_i32, %c0_i32_0 : i32, i32
  }
  func.func @transform_4(%arg0: i32) -> (i32, i32) {
    %c0_i32 = arith.constant 0 : i32
    %c0_i32_0 = arith.constant 0 : i32
    %c0_i32_1 = arith.constant 0 : i32
    return %c0_i32, %c0_i32_0 : i32, i32
  }
  func.func @transform_5(%arg0: i32) -> (i32, i32) {
    %c0_i32 = arith.constant 0 : i32
    %c0_i32_0 = arith.constant 0 : i32
    %c0_i32_1 = arith.constant 0 : i32
    return %c0_i32, %c0_i32_0 : i32, i32
  }
  func.func @transform_6(%arg0: i32) -> (i32, i32) {
    %c0_i32 = arith.constant 0 : i32
    %c0_i32_0 = arith.constant 0 : i32
    %c0_i32_1 = arith.constant 0 : i32
    return %c0_i32, %c0_i32_0 : i32, i32
  }
  func.func @transform_7(%arg0: i32) -> (i32, i32) {
    %c0_i32 = arith.constant 0 : i32
    %c0_i32_0 = arith.constant 0 : i32
    return %arg0, %c0_i32 : i32, i32
  }
}

</mosaic_0001>

<llo_original>
// kernel: tpu_custom_call.1
$region0: #{tpu_custom_call.1}
  #allocation0 [shape = 'u32[]', space=smem, size = 0x4, offset = 0x4, fixed_abs, tag = 'smem constant byte address 0x4 - core index']
  #allocation1 [shape = 'u32[72,128]{1,0:T(1,128)}', space=vmem, size = 0x9000, scoped, tag = 'internal scratch']
  %s0 = inlined_call_operand.hbm [shape: f32[8,128], index: 0, kind: input, shape index: {}]
  %s1 = inlined_call_operand.hbm [shape: bf16[128,256], index: 1, kind: input, shape index: {}]
  %s2 = inlined_call_operand.hbm [shape: f32[1,256], index: 2, kind: input, shape index: {}]
  %s3 = inlined_call_operand.hbm [shape: bf16[256,256], index: 3, kind: input, shape index: {}]
  %s4 = inlined_call_operand.vmem [shape: f32[1,256], index: 4, kind: input, shape index: {}]
  %s5 = inlined_call_operand.hbm [shape: bf16[256,128], index: 5, kind: input, shape index: {}]
  %s6 = inlined_call_operand.vmem [shape: f32[1,128], index: 6, kind: input, shape index: {}]
  %s7 = inlined_call_operand.hbm [shape: f32[8,128], index: 7, kind: output, shape index: {}]
  %s8 = sld [smem:[#allocation0]]
  $region58: #{tpu_custom_call.1} parent=0
    _
  %s10 = ssub.s32 1, %s8
  %s11 = scalar_select 0, %s10, %s8
  $region1: #{tpu_custom_call.1} parent=0
    #allocation2 [shape = 'u8[4096]{0}', space=vmem, size = 0x1000, scoped, tag = 'input window, operand 0, single buffered']
    #allocation3 [shape = 's32[1]{0}', space=sflag, size = 0x4, scoped, tag = 'scoped memory for tpu_custom_call.1']
    #allocation4 [shape = 's32[1]{0}', space=sflag, size = 0x4, scoped, tag = 'scoped memory for tpu_custom_call.1']
    #allocation5 [shape = 'u8[65536]{0}', space=vmem, size = 0x10000, scoped, tag = 'input window, operand 1, single buffered']
    #allocation6 [shape = 's32[1]{0}', space=sflag, size = 0x4, scoped, tag = 'scoped memory for tpu_custom_call.1']
    #allocation7 [shape = 'u8[1024]{0}', space=vmem, size = 0x400, scoped, tag = 'input window, operand 2, single buffered']
    #allocation8 [shape = 'u8[131072]{0}', space=vmem, size = 0x20000, scoped, tag = 'input window, operand 3, single buffered']
    #allocation9 [shape = 's32[1]{0}', space=sflag, size = 0x4, scoped, tag = 'scoped memory for tpu_custom_call.1']
    #allocation10 [shape = 'u8[65536]{0}', space=vmem, size = 0x10000, scoped, tag = 'input window, operand 5, single buffered']
    #allocation11 [shape = 'u8[4096]{0}', space=vmem, size = 0x1000, scoped, tag = 'output window, operand 0, single buffered']
    %12 = vsyncpa [#allocation3], 0
    %13 = vsyncpa [#allocation6], 0
    %14 = vsyncpa [#allocation9], 0
    %15 = vsyncpa [#allocation4], 0
    // Predicated region
    $region2: #{tpu_custom_call.1} parent=1 // pred_check
      _
    $region3: #{tpu_custom_call.1} parent=1 // pred_check_branch
      %17 = sbr.rel (0) target = $region5
    $region4: #{tpu_custom_call.1} parent=1 // pred_region
      %19 = vsyncadd [#allocation3], 0
      %s21 = sshll.u32 %s0, 4
      %s22 = int_to_ptr.hbm [resolvable:$true] %s21
      %s23 = sshll.u32 [#allocation2], 4
      %s24 = int_to_ptr.vmem [resolvable:$true] %s23
      %26 = dma.hbm_to_vmem [thread:$0]  %s22, 128, %s24, [#allocation3]
    $region5: #{tpu_custom_call.1} parent=1 // pred_fallthru
      _
    // Predicated region
    $region6: #{tpu_custom_call.1} parent=1 // pred_check
      _
    $region7: #{tpu_custom_call.1} parent=1 // pred_check_branch
      %28 = sbr.rel (0) target = $region9
    $region8: #{tpu_custom_call.1} parent=1 // pred_region
      %30 = vsyncadd [#allocation6], 0
      %s31 = sshll.u32 %s1, 4
      %s32 = int_to_ptr.hbm [resolvable:$true] %s31
      %s33 = sshll.u32 [#allocation5], 4
      %s34 = int_to_ptr.vmem [resolvable:$true] %s33
      %39 = dma.hbm_to_vmem [thread:$0]  %s32, 2048, %s34, [#allocation6], 128, 128, 8
    $region9: #{tpu_custom_call.1} parent=1 // pred_fallthru
      _
    // Predicated region
    $region10: #{tpu_custom_call.1} parent=1 // pred_check
      _
    $region11: #{tpu_custom_call.1} parent=1 // pred_check_branch
      %41 = sbr.rel (0) target = $region13
    $region12: #{tpu_custom_call.1} parent=1 // pred_region
      %43 = vsyncadd [#allocation6], 0
      %s45 = sshll.u32 %s2, 4
      %s46 = int_to_ptr.hbm [resolvable:$true] %s45
      %s47 = sshll.u32 [#allocation7], 4
      %s48 = int_to_ptr.vmem [resolvable:$true] %s47
      %50 = dma.hbm_to_vmem [thread:$0]  %s46, 32, %s48, [#allocation6]
    $region13: #{tpu_custom_call.1} parent=1 // pred_fallthru
      _
    // Predicated region
    $region14: #{tpu_custom_call.1} parent=1 // pred_check
      _
    $region15: #{tpu_custom_call.1} parent=1 // pred_check_branch
      %52 = sbr.rel (0) target = $region17
    $region16: #{tpu_custom_call.1} parent=1 // pred_region
      %54 = vsyncadd [#allocation9], 0
      %s55 = sshll.u32 %s3, 4
      %s56 = int_to_ptr.hbm [resolvable:$true] %s55
      %s57 = sshll.u32 [#allocation8], 4
      %s58 = int_to_ptr.vmem [resolvable:$true] %s57
      %63 = dma.hbm_to_vmem [thread:$0]  %s56, 4096, %s58, [#allocation9], 128, 128, 8
    $region17: #{tpu_custom_call.1} parent=1 // pred_fallthru
      _
    // Predicated region
    $region18: #{tpu_custom_call.1} parent=1 // pred_check
      _
    $region19: #{tpu_custom_call.1} parent=1 // pred_check_branch
      %65 = sbr.rel (0) target = $region21
    $region20: #{tpu_custom_call.1} parent=1 // pred_region
      _
    $region21: #{tpu_custom_call.1} parent=1 // pred_fallthru
      _
    // Predicated region
    $region22: #{tpu_custom_call.1} parent=1 // pred_check
      _
    $region23: #{tpu_custom_call.1} parent=1 // pred_check_branch
      %67 = sbr.rel (0) target = $region25
    $region24: #{tpu_custom_call.1} parent=1 // pred_region
      %69 = vsyncadd [#allocation9], 0
      %s70 = sshll.u32 %s5, 4
      %s71 = int_to_ptr.hbm [resolvable:$true] %s70
      %s72 = sshll.u32 [#allocation10], 4
      %s73 = int_to_ptr.vmem [resolvable:$true] %s72
      %78 = dma.hbm_to_vmem [thread:$0]  %s71, 2048, %s73, [#allocation9], 64, 64, 4
    $region25: #{tpu_custom_call.1} parent=1 // pred_fallthru
      _
    // Predicated region
    $region26: #{tpu_custom_call.1} parent=1 // pred_check
      _
    $region27: #{tpu_custom_call.1} parent=1 // pred_check_branch
      %80 = sbr.rel (0) target = $region29
    $region28: #{tpu_custom_call.1} parent=1 // pred_region
      _
    $region29: #{tpu_custom_call.1} parent=1 // pred_fallthru
      _
    // Predicated region
    $region30: #{tpu_custom_call.1} parent=1 // pred_check
      _
    $region31: #{tpu_custom_call.1} parent=1 // pred_check_branch
      %82 = sbr.rel (0) target = $region33
    $region32: #{tpu_custom_call.1} parent=1 // pred_region
      %84 = dma.done [#allocation3], 128
    $region33: #{tpu_custom_call.1} parent=1 // pred_fallthru
      _
    // Predicated region
    $region34: #{tpu_custom_call.1} parent=1 // pred_check
      _
    $region35: #{tpu_custom_call.1} parent=1 // pred_check_branch
      %86 = sbr.rel (0) target = $region37
    $region36: #{tpu_custom_call.1} parent=1 // pred_region
      %88 = dma.done [#allocation6], 2048
    $region37: #{tpu_custom_call.1} parent=1 // pred_fallthru
      _
    // Predicated region
    $region38: #{tpu_custom_call.1} parent=1 // pred_check
      _
    $region39: #{tpu_custom_call.1} parent=1 // pred_check_branch
      %90 = sbr.rel (0) target = $region41
    $region40: #{tpu_custom_call.1} parent=1 // pred_region
      %92 = dma.done [#allocation6], 32
    $region41: #{tpu_custom_call.1} parent=1 // pred_fallthru
      _
    // Predicated region
    $region42: #{tpu_custom_call.1} parent=1 // pred_check
      _
    $region43: #{tpu_custom_call.1} parent=1 // pred_check_branch
      %94 = sbr.rel (0) target = $region45
    $region44: #{tpu_custom_call.1} parent=1 // pred_region
      %96 = dma.done [#allocation9], 4096
    $region45: #{tpu_custom_call.1} parent=1 // pred_fallthru
      _
    // Predicated region
    $region46: #{tpu_custom_call.1} parent=1 // pred_check
      _
    $region47: #{tpu_custom_call.1} parent=1 // pred_check_branch
      %98 = sbr.rel (0) target = $region49
    $region48: #{tpu_custom_call.1} parent=1 // pred_region
      %100 = dma.done [#allocation9], 2048
    $region49: #{tpu_custom_call.1} parent=1 // pred_fallthru
      _
    %v101 = vld [vmem:[#allocation2] sm:$0xff]
    %v102 = vpack.c.bf16 %v101, %v101
    %v103 = vld [vmem:[#allocation5] sm:$0xff]
    %v104 = vld [vmem:[#allocation5 + $0x8] sm:$0xff]
    %v105 = vld [vmem:[#allocation5 + $0x10] sm:$0xff]
    %v106 = vld [vmem:[#allocation5 + $0x18] sm:$0xff]
    %v107 = vld [vmem:[#allocation5 + $0x20] sm:$0xff]
    %v108 = vld [vmem:[#allocation5 + $0x28] sm:$0xff]
    %v109 = vld [vmem:[#allocation5 + $0x30] sm:$0xff]
    %v110 = vld [vmem:[#allocation5 + $0x38] sm:$0xff]
    %v111 = vld [vmem:[#allocation5 + $0x40] sm:$0xff]
    %v112 = vld [vmem:[#allocation5 + $0x48] sm:$0xff]
    %v113 = vld [vmem:[#allocation5 + $0x50] sm:$0xff]
    %v114 = vld [vmem:[#allocation5 + $0x58] sm:$0xff]
    %v115 = vld [vmem:[#allocation5 + $0x60] sm:$0xff]
    %v116 = vld [vmem:[#allocation5 + $0x68] sm:$0xff]
    %v117 = vld [vmem:[#allocation5 + $0x70] sm:$0xff]
    %v118 = vld [vmem:[#allocation5 + $0x78] sm:$0xff]
    %v135 = vunpack.c.l.b16 %v103
    %v136 = vunpack.c.h.b16 %v103
    %v137 = vunpack.c.l.b16 %v104
    %v138 = vunpack.c.h.b16 %v104
    %v139 = vunpack.c.l.b16 %v105
    %v140 = vunpack.c.h.b16 %v105
    %v141 = vunpack.c.l.b16 %v106
    %v142 = vunpack.c.h.b16 %v106
    %v143 = vunpack.c.l.b16 %v107
    %v144 = vunpack.c.h.b16 %v107
    %v145 = vunpack.c.l.b16 %v108
    %v146 = vunpack.c.h.b16 %v108
    %v147 = vunpack.c.l.b16 %v109
    %v148 = vunpack.c.h.b16 %v109
    %v149 = vunpack.c.l.b16 %v110
    %v150 = vunpack.c.h.b16 %v110
    %v151 = vunpack.c.l.b16 %v111
    %v152 = vunpack.c.h.b16 %v111
    %v153 = vunpack.c.l.b16 %v112
    %v154 = vunpack.c.h.b16 %v112
    %v155 = vunpack.c.l.b16 %v113
    %v156 = vunpack.c.h.b16 %v113
    %v157 = vunpack.c.l.b16 %v114
    %v158 = vunpack.c.h.b16 %v114
    %v159 = vunpack.c.l.b16 %v115
    %v160 = vunpack.c.h.b16 %v115
    %v161 = vunpack.c.l.b16 %v116
    %v162 = vunpack.c.h.b16 %v116
    %v163 = vunpack.c.l.b16 %v117
    %v164 = vunpack.c.h.b16 %v117
    %v165 = vunpack.c.l.b16 %v118
    %v166 = vunpack.c.h.b16 %v118
    %v167 = vpack.c.b16 %v137, %v135
    %v168 = vpack.c.b16 %v138, %v136
    %v169 = vpack.c.b16 %v141, %v139
    %v170 = vpack.c.b16 %v142, %v140
    %v171 = vpack.c.b16 %v145, %v143
    %v172 = vpack.c.b16 %v146, %v144
    %v173 = vpack.c.b16 %v149, %v147
    %v174 = vpack.c.b16 %v150, %v148
    %v175 = vpack.c.b16 %v153, %v151
    %v176 = vpack.c.b16 %v154, %v152
    %v177 = vpack.c.b16 %v157, %v155
    %v178 = vpack.c.b16 %v158, %v156
    %v179 = vpack.c.b16 %v161, %v159
    %v180 = vpack.c.b16 %v162, %v160
    %v181 = vpack.c.b16 %v165, %v163
    %v182 = vpack.c.b16 %v166, %v164
    %199 = vmatpush.bf16.msra.mxu0 %v181
    %200 = vmatpush.bf16.msra.mxu0 %v179
    %201 = vmatpush.bf16.msra.mxu0 %v177
    %202 = vmatpush.bf16.msra.mxu0 %v175
    %203 = vmatpush.bf16.msra.mxu0 %v173
    %204 = vmatpush.bf16.msra.mxu0 %v171
    %205 = vmatpush.bf16.msra.mxu0 %v169
    %206 = vmatpush.bf16.msra.mxu0 %v167
    %207 = vmatmul.bf16.gmra.mxu0 %v102
    %v208 = vpop.f32.mrf.mxu0
    %v209 = vadd.f32 0.0, %v208
    %v210 = vpop.f32.mrf.mxu0
    %211 = vdwg.mxu0
    %212 = vmatpush.bf16.msra.mxu0 %v182
    %213 = vmatpush.bf16.msra.mxu0 %v180
    %214 = vmatpush.bf16.msra.mxu0 %v178
    %215 = vmatpush.bf16.msra.mxu0 %v176
    %216 = vmatpush.bf16.msra.mxu0 %v174
    %217 = vmatpush.bf16.msra.mxu0 %v172
    %218 = vmatpush.bf16.msra.mxu0 %v170
    %219 = vmatpush.bf16.msra.mxu0 %v168
    %220 = vmatmul.bf16.gmra.mxu0 %v102
    %v221 = vpop.f32.mrf.mxu0
    %v222 = vadd.f32 0.0, %v221
    %v223 = vpop.f32.mrf.mxu0
    %224 = vdwg.mxu0
    %v225 = vpack.c.bf16 %v222, %v209
    %v226 = vld [vmem:[#allocation7] sm:$0x3]
    %v228 = vperm.slane %v226, 0
    %v229 = vperm.slane %v226, 1
    %v232 = vpack.c.bf16 %v229, %v228
    %v234 = vunpack.c.l.b16 %v232
    %v235 = vunpack.c.h.b16 %v232
    %v236 = vpack.c.b16 %v234, %v234
    %v237 = vpack.c.b16 %v235, %v235
    %v239 = vpack.i.b16 %v236, %v236
    %v241 = vperm.slane %v239, 0
    %v243 = vpack.i.b16 %v237, %v237
    %v245 = vperm.slane %v243, 0
    %v246 = vunpack.c.l.bf16 %v225
    %v247 = vunpack.c.h.bf16 %v225
    %v248 = vunpack.c.l.bf16 %v241
    %v249 = vunpack.c.l.bf16 %v245
    %v250 = vadd.f32 %v246, %v248
    %v251 = vadd.f32 %v247, %v249
    %v252 = vpack.c.bf16 %v251, %v250
    %v253 = vunpack.c.l.bf16 %v252
    %v254 = vunpack.c.h.bf16 %v252
    %v255 = vmax.f32 %v253, 0.0
    %v256 = vmax.f32 %v254, 0.0
    %v257 = vpack.c.bf16 %v255, %v255
    %v258 = vpack.c.bf16 %v256, %v256
    %v259 = vld [vmem:[#allocation8] sm:$0xff]
    %v260 = vld [vmem:[#allocation8 + $0x8] sm:$0xff]
    %v261 = vld [vmem:[#allocation8 + $0x10] sm:$0xff]
    %v262 = vld [vmem:[#allocation8 + $0x18] sm:$0xff]
    %v263 = vld [vmem:[#allocation8 + $0x20] sm:$0xff]
    %v264 = vld [vmem:[#allocation8 + $0x28] sm:$0xff]
    %v265 = vld [vmem:[#allocation8 + $0x30] sm:$0xff]
    %v266 = vld [vmem:[#allocation8 + $0x38] sm:$0xff]
    %v267 = vld [vmem:[#allocation8 + $0x40] sm:$0xff]
    %v268 = vld [vmem:[#allocation8 + $0x48] sm:$0xff]
    %v269 = vld [vmem:[#allocation8 + $0x50] sm:$0xff]
    %v270 = vld [vmem:[#allocation8 + $0x58] sm:$0xff]
    %v271 = vld [vmem:[#allocation8 + $0x60] sm:$0xff]
    %v272 = vld [vmem:[#allocation8 + $0x68] sm:$0xff]
    %v273 = vld [vmem:[#allocation8 + $0x70] sm:$0xff]
    %v274 = vld [vmem:[#allocation8 + $0x78] sm:$0xff]
    %v275 = vld [vmem:[#allocation8 + $0x80] sm:$0xff]
    %v276 = vld [vmem:[#allocation8 + $0x88] sm:$0xff]
    %v277 = vld [vmem:[#allocation8 + $0x90] sm:$0xff]
    %v278 = vld [vmem:[#allocation8 + $0x98] sm:$0xff]
    %v279 = vld [vmem:[#allocation8 + $0xa0] sm:$0xff]
    %v280 = vld [vmem:[#allocation8 + $0xa8] sm:$0xff]
    %v281 = vld [vmem:[#allocation8 + $0xb0] sm:$0xff]
    %v282 = vld [vmem:[#allocation8 + $0xb8] sm:$0xff]
    %v283 = vld [vmem:[#allocation8 + $0xc0] sm:$0xff]
    %v284 = vld [vmem:[#allocation8 + $0xc8] sm:$0xff]
    %v285 = vld [vmem:[#allocation8 + $0xd0] sm:$0xff]
    %v286 = vld [vmem:[#allocation8 + $0xd8] sm:$0xff]
    %v287 = vld [vmem:[#allocation8 + $0xe0] sm:$0xff]
    %v288 = vld [vmem:[#allocation8 + $0xe8] sm:$0xff]
    %v289 = vld [vmem:[#allocation8 + $0xf0] sm:$0xff]
    %v290 = vld [vmem:[#allocation8 + $0xf8] sm:$0xff]
    %v323 = vunpack.c.l.b16 %v259
    %v324 = vunpack.c.h.b16 %v259
    %v325 = vunpack.c.l.b16 %v260
    %v326 = vunpack.c.h.b16 %v260
    %v327 = vunpack.c.l.b16 %v261
    %v328 = vunpack.c.h.b16 %v261
    %v329 = vunpack.c.l.b16 %v262
    %v330 = vunpack.c.h.b16 %v262
    %v331 = vunpack.c.l.b16 %v263
    %v332 = vunpack.c.h.b16 %v263
    %v333 = vunpack.c.l.b16 %v264
    %v334 = vunpack.c.h.b16 %v264
    %v335 = vunpack.c.l.b16 %v265
    %v336 = vunpack.c.h.b16 %v265
    %v337 = vunpack.c.l.b16 %v266
    %v338 = vunpack.c.h.b16 %v266
    %v339 = vunpack.c.l.b16 %v267
    %v340 = vunpack.c.h.b16 %v267
    %v341 = vunpack.c.l.b16 %v268
    %v342 = vunpack.c.h.b16 %v268
    %v343 = vunpack.c.l.b16 %v269
    %v344 = vunpack.c.h.b16 %v269
    %v345 = vunpack.c.l.b16 %v270
    %v346 = vunpack.c.h.b16 %v270
    %v347 = vunpack.c.l.b16 %v271
    %v348 = vunpack.c.h.b16 %v271
    %v349 = vunpack.c.l.b16 %v272
    %v350 = vunpack.c.h.b16 %v272
    %v351 = vunpack.c.l.b16 %v273
    %v352 = vunpack.c.h.b16 %v273
    %v353 = vunpack.c.l.b16 %v274
    %v354 = vunpack.c.h.b16 %v274
    %v355 = vunpack.c.l.b16 %v275
    %v356 = vunpack.c.h.b16 %v275
    %v357 = vunpack.c.l.b16 %v276
    %v358 = vunpack.c.h.b16 %v276
    %v359 = vunpack.c.l.b16 %v277
    %v360 = vunpack.c.h.b16 %v277
    %v361 = vunpack.c.l.b16 %v278
    %v362 = vunpack.c.h.b16 %v278
    %v363 = vunpack.c.l.b16 %v279
    %v364 = vunpack.c.h.b16 %v279
    %v365 = vunpack.c.l.b16 %v280
    %v366 = vunpack.c.h.b16 %v280
    %v367 = vunpack.c.l.b16 %v281
    %v368 = vunpack.c.h.b16 %v281
    %v369 = vunpack.c.l.b16 %v282
    %v370 = vunpack.c.h.b16 %v282
    %v371 = vunpack.c.l.b16 %v283
    %v372 = vunpack.c.h.b16 %v283
    %v373 = vunpack.c.l.b16 %v284
    %v374 = vunpack.c.h.b16 %v284
    %v375 = vunpack.c.l.b16 %v285
    %v376 = vunpack.c.h.b16 %v285
    %v377 = vunpack.c.l.b16 %v286
    %v378 = vunpack.c.h.b16 %v286
    %v379 = vunpack.c.l.b16 %v287
    %v380 = vunpack.c.h.b16 %v287
    %v381 = vunpack.c.l.b16 %v288
    %v382 = vunpack.c.h.b16 %v288
    %v383 = vunpack.c.l.b16 %v289
    %v384 = vunpack.c.h.b16 %v289
    %v385 = vunpack.c.l.b16 %v290
    %v386 = vunpack.c.h.b16 %v290
    %v387 = vpack.c.b16 %v325, %v323
    %v388 = vpack.c.b16 %v326, %v324
    %v389 = vpack.c.b16 %v329, %v327
    %v390 = vpack.c.b16 %v330, %v328
    %v391 = vpack.c.b16 %v333, %v331
    %v392 = vpack.c.b16 %v334, %v332
    %v393 = vpack.c.b16 %v337, %v335
    %v394 = vpack.c.b16 %v338, %v336
    %v395 = vpack.c.b16 %v341, %v339
    %v396 = vpack.c.b16 %v342, %v340
    %v397 = vpack.c.b16 %v345, %v343
    %v398 = vpack.c.b16 %v346, %v344
    %v399 = vpack.c.b16 %v349, %v347
    %v400 = vpack.c.b16 %v350, %v348
    %v401 = vpack.c.b16 %v353, %v351
    %v402 = vpack.c.b16 %v354, %v352
    %v403 = vpack.c.b16 %v357, %v355
    %v404 = vpack.c.b16 %v358, %v356
    %v405 = vpack.c.b16 %v361, %v359
    %v406 = vpack.c.b16 %v362, %v360
    %v407 = vpack.c.b16 %v365, %v363
    %v408 = vpack.c.b16 %v366, %v364
    %v409 = vpack.c.b16 %v369, %v367
    %v410 = vpack.c.b16 %v370, %v368
    %v411 = vpack.c.b16 %v373, %v371
    %v412 = vpack.c.b16 %v374, %v372
    %v413 = vpack.c.b16 %v377, %v375
    %v414 = vpack.c.b16 %v378, %v376
    %v415 = vpack.c.b16 %v381, %v379
    %v416 = vpack.c.b16 %v382, %v380
    %v417 = vpack.c.b16 %v385, %v383
    %v418 = vpack.c.b16 %v386, %v384
    %451 = vmatpush.bf16.msra.mxu0 %v401
    %452 = vmatpush.bf16.msra.mxu0 %v399
    %453 = vmatpush.bf16.msra.mxu0 %v397
    %454 = vmatpush.bf16.msra.mxu0 %v395
    %455 = vmatpush.bf16.msra.mxu0 %v393
    %456 = vmatpush.bf16.msra.mxu0 %v391
    %457 = vmatpush.bf16.msra.mxu0 %v389
    %458 = vmatpush.bf16.msra.mxu0 %v387
    %459 = vmatmul.bf16.gmra.mxu0 %v257
    %v460 = vpop.f32.mrf.mxu0
    %v461 = vadd.f32 0.0, %v460
    %v462 = vpop.f32.mrf.mxu0
    %463 = vdwg.mxu0
    %464 = vmatpush.bf16.msra.mxu0 %v417
    %465 = vmatpush.bf16.msra.mxu0 %v415
    %466 = vmatpush.bf16.msra.mxu0 %v413
    %467 = vmatpush.bf16.msra.mxu0 %v411
    %468 = vmatpush.bf16.msra.mxu0 %v409
    %469 = vmatpush.bf16.msra.mxu0 %v407
    %470 = vmatpush.bf16.msra.mxu0 %v405
    %471 = vmatpush.bf16.msra.mxu0 %v403
    %472 = vmatmul.bf16.gmra.mxu0 %v258
    %v473 = vpop.f32.mrf.mxu0
    %v474 = vadd.f32 %v461, %v473
    %v475 = vpop.f32.mrf.mxu0
    %476 = vdwg.mxu0
    %477 = vmatpush.bf16.msra.mxu0 %v402
    %478 = vmatpush.bf16.msra.mxu0 %v400
    %479 = vmatpush.bf16.msra.mxu0 %v398
    %480 = vmatpush.bf16.msra.mxu0 %v396
    %481 = vmatpush.bf16.msra.mxu0 %v394
    %482 = vmatpush.bf16.msra.mxu0 %v392
    %483 = vmatpush.bf16.msra.mxu0 %v390
    %484 = vmatpush.bf16.msra.mxu0 %v388
    %485 = vmatmul.bf16.gmra.mxu0 %v257
    %v486 = vpop.f32.mrf.mxu0
    %v487 = vadd.f32 0.0, %v486
    %v488 = vpop.f32.mrf.mxu0
    %489 = vdwg.mxu0
    %490 = vmatpush.bf16.msra.mxu0 %v418
    %491 = vmatpush.bf16.msra.mxu0 %v416
    %492 = vmatpush.bf16.msra.mxu0 %v414
    %493 = vmatpush.bf16.msra.mxu0 %v412
    %494 = vmatpush.bf16.msra.mxu0 %v410
    %495 = vmatpush.bf16.msra.mxu0 %v408
    %496 = vmatpush.bf16.msra.mxu0 %v406
    %497 = vmatpush.bf16.msra.mxu0 %v404
    %498 = vmatmul.bf16.gmra.mxu0 %v258
    %v499 = vpop.f32.mrf.mxu0
    %v500 = vadd.f32 %v487, %v499
    %v501 = vpop.f32.mrf.mxu0
    %502 = vdwg.mxu0
    %v503 = vpack.c.bf16 %v500, %v474
    %v504 = vld [vmem:[%s4] sm:$0x3]
    %v506 = vperm.slane %v504, 0
    %v507 = vperm.slane %v504, 1
    %v510 = vpack.c.bf16 %v507, %v506
    %v512 = vunpack.c.l.b16 %v510
    %v513 = vunpack.c.h.b16 %v510
    %v514 = vpack.c.b16 %v512, %v512
    %v515 = vpack.c.b16 %v513, %v513
    %v517 = vpack.i.b16 %v514, %v514
    %v519 = vperm.slane %v517, 0
    %v521 = vpack.i.b16 %v515, %v515
    %v523 = vperm.slane %v521, 0
    %v524 = vunpack.c.l.bf16 %v503
    %v525 = vunpack.c.h.bf16 %v503
    %v526 = vunpack.c.l.bf16 %v519
    %v527 = vunpack.c.l.bf16 %v523
    %v528 = vadd.f32 %v524, %v526
    %v529 = vadd.f32 %v525, %v527
    %v530 = vpack.c.bf16 %v529, %v528
    %v531 = vunpack.c.l.bf16 %v530
    %v532 = vunpack.c.h.bf16 %v530
    %v533 = vmax.f32 %v531, 0.0
    %v534 = vmax.f32 %v532, 0.0
    %v535 = vpack.c.bf16 %v533, %v533
    %v536 = vpack.c.bf16 %v534, %v534
    %v537 = vld [vmem:[#allocation10] sm:$0xf]
    %v538 = vld [vmem:[#allocation10 + $0x4] sm:$0xf]
    %v539 = vld [vmem:[#allocation10 + $0x8] sm:$0xf]
    %v540 = vld [vmem:[#allocation10 + $0xc] sm:$0xf]
    %v541 = vld [vmem:[#allocation10 + $0x10] sm:$0xf]
    %v542 = vld [vmem:[#allocation10 + $0x14] sm:$0xf]
    %v543 = vld [vmem:[#allocation10 + $0x18] sm:$0xf]
    %v544 = vld [vmem:[#allocation10 + $0x1c] sm:$0xf]
    %v545 = vld [vmem:[#allocation10 + $0x20] sm:$0xf]
    %v546 = vld [vmem:[#allocation10 + $0x24] sm:$0xf]
    %v547 = vld [vmem:[#allocation10 + $0x28] sm:$0xf]
    %v548 = vld [vmem:[#allocation10 + $0x2c] sm:$0xf]
    %v549 = vld [vmem:[#allocation10 + $0x30] sm:$0xf]
    %v550 = vld [vmem:[#allocation10 + $0x34] sm:$0xf]
    %v551 = vld [vmem:[#allocation10 + $0x38] sm:$0xf]
    %v552 = vld [vmem:[#allocation10 + $0x3c] sm:$0xf]
    %v553 = vld [vmem:[#allocation10 + $0x40] sm:$0xf]
    %v554 = vld [vmem:[#allocation10 + $0x44] sm:$0xf]
    %v555 = vld [vmem:[#allocation10 + $0x48] sm:$0xf]
    %v556 = vld [vmem:[#allocation10 + $0x4c] sm:$0xf]
    %v557 = vld [vmem:[#allocation10 + $0x50] sm:$0xf]
    %v558 = vld [vmem:[#allocation10 + $0x54] sm:$0xf]
    %v559 = vld [vmem:[#allocation10 + $0x58] sm:$0xf]
    %v560 = vld [vmem:[#allocation10 + $0x5c] sm:$0xf]
    %v561 = vld [vmem:[#allocation10 + $0x60] sm:$0xf]
    %v562 = vld [vmem:[#allocation10 + $0x64] sm:$0xf]
    %v563 = vld [vmem:[#allocation10 + $0x68] sm:$0xf]
    %v564 = vld [vmem:[#allocation10 + $0x6c] sm:$0xf]
    %v565 = vld [vmem:[#allocation10 + $0x70] sm:$0xf]
    %v566 = vld [vmem:[#allocation10 + $0x74] sm:$0xf]
    %v567 = vld [vmem:[#allocation10 + $0x78] sm:$0xf]
    %v568 = vld [vmem:[#allocation10 + $0x7c] sm:$0xf]
    %v569 = vld [vmem:[%s6] sm:$0x1]
    %v571 = vperm.slane %v569, 0
    %v605 = vunpack.c.l.b16 %v537
    %v606 = vunpack.c.l.b16 %v538
    %v607 = vunpack.c.l.b16 %v539
    %v608 = vunpack.c.l.b16 %v540
    %v609 = vunpack.c.l.b16 %v541
    %v610 = vunpack.c.l.b16 %v542
    %v611 = vunpack.c.l.b16 %v543
    %v612 = vunpack.c.l.b16 %v544
    %v613 = vunpack.c.l.b16 %v545
    %v614 = vunpack.c.l.b16 %v546
    %v615 = vunpack.c.l.b16 %v547
    %v616 = vunpack.c.l.b16 %v548
    %v617 = vunpack.c.l.b16 %v549
    %v618 = vunpack.c.l.b16 %v550
    %v619 = vunpack.c.l.b16 %v551
    %v620 = vunpack.c.l.b16 %v552
    %v621 = vunpack.c.l.b16 %v553
    %v622 = vunpack.c.l.b16 %v554
    %v623 = vunpack.c.l.b16 %v555
    %v624 = vunpack.c.l.b16 %v556
    %v625 = vunpack.c.l.b16 %v557
    %v626 = vunpack.c.l.b16 %v558
    %v627 = vunpack.c.l.b16 %v559
    %v628 = vunpack.c.l.b16 %v560
    %v629 = vunpack.c.l.b16 %v561
    %v630 = vunpack.c.l.b16 %v562
    %v631 = vunpack.c.l.b16 %v563
    %v632 = vunpack.c.l.b16 %v564
    %v633 = vunpack.c.l.b16 %v565
    %v634 = vunpack.c.l.b16 %v566
    %v635 = vunpack.c.l.b16 %v567
    %v636 = vunpack.c.l.b16 %v568
    %v637 = vpack.c.b16 %v606, %v605
    %v638 = vpack.c.b16 %v608, %v607
    %v639 = vpack.c.b16 %v610, %v609
    %v640 = vpack.c.b16 %v612, %v611
    %v641 = vpack.c.b16 %v614, %v613
    %v642 = vpack.c.b16 %v616, %v615
    %v643 = vpack.c.b16 %v618, %v617
    %v644 = vpack.c.b16 %v620, %v619
    %v645 = vpack.c.b16 %v622, %v621
    %v646 = vpack.c.b16 %v624, %v623
    %v647 = vpack.c.b16 %v626, %v625
    %v648 = vpack.c.b16 %v628, %v627
    %v649 = vpack.c.b16 %v630, %v629
    %v650 = vpack.c.b16 %v632, %v631
    %v651 = vpack.c.b16 %v634, %v633
    %v652 = vpack.c.b16 %v636, %v635
    %669 = vmatpush.bf16.msra.mxu0 %v644
    %670 = vmatpush.bf16.msra.mxu0 %v643
    %671 = vmatpush.bf16.msra.mxu0 %v642
    %672 = vmatpush.bf16.msra.mxu0 %v641
    %673 = vmatpush.bf16.msra.mxu0 %v640
    %674 = vmatpush.bf16.msra.mxu0 %v639
    %675 = vmatpush.bf16.msra.mxu0 %v638
    %676 = vmatpush.bf16.msra.mxu0 %v637
    %677 = vmatmul.bf16.gmra.mxu0 %v535
    %v678 = vpop.f32.mrf.mxu0
    %v679 = vadd.f32 %v571, %v678
    %v680 = vpop.f32.mrf.mxu0
    %681 = vdwg.mxu0
    %682 = vmatpush.bf16.msra.mxu0 %v652
    %683 = vmatpush.bf16.msra.mxu0 %v651
    %684 = vmatpush.bf16.msra.mxu0 %v650
    %685 = vmatpush.bf16.msra.mxu0 %v649
    %686 = vmatpush.bf16.msra.mxu0 %v648
    %687 = vmatpush.bf16.msra.mxu0 %v647
    %688 = vmatpush.bf16.msra.mxu0 %v646
    %689 = vmatpush.bf16.msra.mxu0 %v645
    %690 = vmatmul.bf16.gmra.mxu0 %v536
    %v691 = vpop.f32.mrf.mxu0
    %v692 = vadd.f32 %v679, %v691
    %v693 = vpop.f32.mrf.mxu0
    %694 = vdwg.mxu0
    %695 = vmax.xlane.f32.xlu0 %v692
    %v696 = vpop.xlane.xlu0 %695
    %v697 = vsub.f32 %v692, %v696
    %v698 = vmul.f32 %v697, 1.442695
    %v699 = vpow.pop %v698
    %700 = vadd.xlane.f32.xlu0 %v699
    %v701 = vpop.xlane.xlu0 %700
    %v702 = vrcp.pop %v701
    %v703 = vmul.f32 %v701, %v702
    %v704 = vsub.f32 1.0, %v703
    %v705 = vmul.f32 %v702, %v704
    %v706 = vadd.f32 %v702, %v705
    %vm707 = vweird.f32 %v701
    %vm708 = vweird.f32 %v702
    %vm709 = vmor %vm707, %vm708
    %v710 = vsel %vm709, %v702, %v706
    %v711 = vand.u32 2147483647, %v701
    %vm712 = vcmp.eq.f32.partialorder %v711, 8.507059e+37
    %v713 = vand.u32 %v701, 2147483648
    %v714 = vor.u32 1.1754944e-38, %v713
    %v715 = vsel %vm712, %v714, %v710
    %v716 = vmul.f32 %v699, %v715
    %717 = vst [vmem:[#allocation11] sm:$0xff] %v716
    // Predicated region
    $region50: #{tpu_custom_call.1} parent=1 // pred_check
      _
    $region51: #{tpu_custom_call.1} parent=1 // pred_check_branch
      %719 = sbr.rel (0) target = $region53
    $region52: #{tpu_custom_call.1} parent=1 // pred_region
      %721 = vsyncadd [#allocation4], 0
      %s723 = sshll.u32 [#allocation11], 4
      %s724 = int_to_ptr.vmem [resolvable:$true] %s723
      %s725 = sshll.u32 %s7, 4
      %s726 = int_to_ptr.hbm [resolvable:$true] %s725
      %728 = dma.vmem_to_hbm [thread:$0]  %s724, 128, %s726, [#allocation4]
    $region53: #{tpu_custom_call.1} parent=1 // pred_fallthru
      _
    // Predicated region
    $region54: #{tpu_custom_call.1} parent=1 // pred_check
      _
    $region55: #{tpu_custom_call.1} parent=1 // pred_check_branch
      %730 = sbr.rel (0) target = $region57
    $region56: #{tpu_custom_call.1} parent=1 // pred_region
      %732 = dma.done [#allocation4], 128
    $region57: #{tpu_custom_call.1} parent=1 // pred_fallthru
      _
    %733 = vsyncpa [#allocation3], 1
    %734 = vsyncpa [#allocation6], 1
    %735 = vsyncpa [#allocation9], 1
    %736 = vsyncpa [#allocation4], 1

</llo_original>
